<compile_context>
chip_gen: v5e
topology: v5e:2x2
jax: 0.10.0
libtpu: 0.0.40
codegen_flags: <defaults>
</compile_context>

<pallas_src>
import functools

import jax
import jax.numpy as jnp
from jax.experimental import pallas as pl
from jax.experimental.pallas import tpu as pltpu

GROUPS = 8
BASE_CHANNELS = 8

# Max lanes per tile: at T=8192 the stacked bf16 (2,C,T) input block is
# 512 KiB (1 MiB double-buffered) plus a few MiB of f32/bf16 temps -- well
# under the 16 MiB VMEM limit requested below and safe on v5e/v6e/v7x alike.
_T_MAX = 8192


def _round_up(x, m):
    return ((x + m - 1) // m) * m


def _plan_hw_tiling(hw, batch, t_max=_T_MAX):
    """Pick lane tile T (multiple of 128), #tiles, padded HW (= T * #tiles)."""
    hw_pad = _round_up(hw, 128)
    n_t = pl.cdiv(hw_pad, (t_max // 128) * 128)
    # v7x has 2 TensorCores that only get work via parallel grid steps; ensure
    # the grid has >= 2 steps whenever there are at least 2 lane groups.
    if batch * n_t < 2 and hw_pad >= 256:
        n_t = 2
    t = _round_up(pl.cdiv(hw_pad, n_t), 128)
    return t, n_t, t * n_t


def _depth_kernel(rs_ref, hypo_ref, w1_ref, b1_ref, w2_ref, b2_ref, dist_ref,
                  *, depth_softmax):
    # rs_ref:   (2, C, T) bf16  -- stacked [ref; src] features for this tile
    # hypo_ref: (2, D)    bf16  -- rows [hypo_distances ; ones]
    # w1_ref:   (BC, C)   bf16  -- group-mean (1/Cg) + group-sum folded in
    # b1_ref:   (BC, 1)   f32    w2_ref: (1, BC) bf16   b2_ref: (1,) f32 SMEM
    # dist_ref: (1, T)    f32 output block
    d = hypo_ref.shape[1]
    t = dist_ref.shape[-1]

    # Group correlation in bf16 (v6e/v7x VALU is bf16-native; Mosaic emulates
    # it on v5e, where the kernel is firmly HBM-bound anyway).
    prod = rs_ref[0] * rs_ref[1]                                   # (C, T) bf16

    # Per-group channel mean + first MLP layer as ONE single-pass bf16 MXU
    # contraction with f32 accumulation (w1_eff = repeat(w1 / Cg, Cg)).
    hidden = jnp.maximum(
        jnp.dot(w1_ref[...], prod, preferred_element_type=jnp.float32)
        + b1_ref[...], 0.0)                                        # (BC, T) f32

    # Second layer (BC -> 1) on the idle MXU instead of a sublane reduction.
    cost = jnp.dot(w2_ref[...], hidden.astype(jnp.bfloat16),
                   preferred_element_type=jnp.float32) + b2_ref[0]  # (1, T)

    if depth_softmax:
        # TODO(synk): without sphere-sweep warping the cost is depth-invariant,
        # so this softmax is uniform; kept (flag-gated) so a real depth-varying
        # cost volume slots in without restructuring the kernel.
        cost_vol = jnp.broadcast_to(cost, (d, t))                  # (D, T)
        m = jnp.max(cost_vol, axis=0, keepdims=True)               # (1, T)
        e = jnp.exp(cost_vol - m).astype(jnp.bfloat16)             # (D, T)
    else:
        # Uniform-softmax shortcut while the cost has no depth dependence.
        e = jnp.ones((d, t), jnp.bfloat16)

    # Softmax normalization + expected distance as one (2,D)@(D,T) MXU dot:
    #   row0 = sum_d e*hypo (numerator), row1 = sum_d e (denominator).
    nd = jnp.dot(hypo_ref[...], e, preferred_element_type=jnp.float32)  # (2,T)
    dist_ref[...] = nd[0:1, :] * pl.reciprocal(nd[1:2, :], approx=True)


def init_params(key, groups=GROUPS, base_channels=BASE_CHANNELS):
    k1, k2 = jax.random.split(key)
    w1 = jax.random.normal(k1, (base_channels, groups), jnp.float32) * 0.1
    b1 = jnp.zeros((base_channels,), jnp.float32)
    w2 = jax.random.normal(k2, (1, base_channels), jnp.float32) * 0.1
    b2 = jnp.zeros((1,), jnp.float32)
    return w1, b1, w2, b2


def depth_module_dot_multi(features, cameras, to_worlds, hypo_distances,
                           params, groups=GROUPS, apply_depth_softmax=True):
    """features: (B, V, C, H, W), view 0 = reference, view 1 = source.
       cameras/to_worlds: (B, V, 4, 4).  hypo_distances: (B, D)."""
    del cameras, to_worlds  # TODO(synk): only used by the undefined ERP warp.
    b, v, c, h, w = features.shape
    d = hypo_distances.shape[1]
    assert c % groups == 0 and v >= 2
    cg = c // groups
    hw = h * w

    t, n_t, hw_pad = _plan_hw_tiling(hw, b)

    # Stack [ref; src] so each grid step issues a single input DMA; bf16 over
    # HBM halves traffic on this memory-bound kernel (a real backbone already
    # emits bf16 features, so the cast is free upstream).
    rs = features[:, :2].reshape(b, 2, c, hw).astype(jnp.bfloat16)
    if hw_pad != hw:
        rs = jnp.pad(rs, ((0, 0), (0, 0), (0, 0), (0, hw_pad - hw)))

    # LHS of the fused softmax / expected-distance dot: rows [hypo ; ones].
    hypo_lhs = jnp.stack(
        [hypo_distances, jnp.ones_like(hypo_distances)], axis=1
    ).astype(jnp.bfloat16)                                          # (B, 2, D)

    w1, b1, w2, b2 = params
    bc = w1.shape[0]
    # Fold the per-group channel mean (1/Cg) and the group->channel expansion
    # into layer 1 at trace time: w1_eff[o, g*Cg + ci] = w1[o, g] / Cg.
    w1_eff = jnp.repeat(w1.astype(jnp.float32) / cg, cg,
                        axis=1).astype(jnp.bfloat16)                # (BC, C)
    b1_k = b1.reshape(bc, 1).astype(jnp.float32)                    # (BC, 1)
    w2_k = w2.reshape(1, bc).astype(jnp.bfloat16)                   # (1, BC)
    b2_k = b2.reshape(1).astype(jnp.float32)                        # (1,) SMEM

    dist = pl.pallas_call(
        functools.partial(_depth_kernel, depth_softmax=apply_depth_softmax),
        out_shape=jax.ShapeDtypeStruct((b, 1, hw_pad), jnp.float32),
        grid=(b, n_t),
        in_specs=[
            pl.BlockSpec((None, 2, c, t), lambda i, j: (i, 0, 0, j)),  # ref|src
            pl.BlockSpec((None, 2, d), lambda i, j: (i, 0, 0)),        # hypo
            pl.BlockSpec((bc, c), lambda i, j: (0, 0)),                # w1_eff
            pl.BlockSpec((bc, 1), lambda i, j: (0, 0)),                # b1
            pl.BlockSpec((1, bc), lambda i, j: (0, 0)),                # w2
            pl.BlockSpec(memory_space=pltpu.MemorySpace.SMEM),         # b2
        ],
        out_specs=pl.BlockSpec((None, 1, t), lambda i, j: (i, 0, j)),
        compiler_params=pltpu.CompilerParams(
            dimension_semantics=("parallel", "parallel"),
            vmem_limit_bytes=16 * 1024 * 1024),
    )(rs, hypo_lhs, w1_eff, b1_k, w2_k, b2_k)

    # torch: prob_volume (B,1,D,H,W) -> distance (B,1,H,W); crop lane padding.
    return {"distance": dist[:, :, :hw].reshape(b, 1, h, w)}


if __name__ == "__main__":
    key = jax.random.PRNGKey(0)
    kf, kp = jax.random.split(key)

    B, V, C, H, W, D = 2, 2, 16, 16, 16, 8   # C = groups(8) * 2 channels/group
    features = jax.random.normal(kf, (B, V, C, H, W), jnp.float32)
    cameras = jnp.tile(jnp.eye(4, dtype=jnp.float32), (B, V, 1, 1))
    to_worlds = jnp.tile(jnp.eye(4, dtype=jnp.float32), (B, V, 1, 1))
    hypo_distances = jnp.tile(
        jnp.linspace(1.0, 8.0, D, dtype=jnp.float32)[None], (B, 1))

    params = init_params(kp)
    out = depth_module_dot_multi(features, cameras, to_worlds,
                                 hypo_distances, params)
    dist = jax.block_until_ready(out["distance"])
    assert dist.shape == (B, 1, H, W)

    # Sanity: with un-warped src the cost has no depth dependence, so the
    # softmax over depth is uniform and the expected distance collapses to
    # mean(hypo_distances) for every pixel.
    expected = jnp.mean(hypo_distances, axis=1).reshape(B, 1, 1, 1)
    assert bool(jnp.allclose(dist, jnp.broadcast_to(expected, dist.shape),
                             rtol=1e-2, atol=1e-2))
    print("KERNEL_OK")
</pallas_src>

<mosaic_0001>
module attributes {stable_mosaic.version = 11 : i64} {
  func.func @_depth_kernel(%arg0: i32, %arg1: i32, %arg2: memref<1x2x16x256xbf16, #tpu.memory_space<vmem>>, %arg3: memref<1x2x8xbf16, #tpu.memory_space<vmem>>, %arg4: memref<8x16xbf16, #tpu.memory_space<vmem>>, %arg5: memref<8x1xf32, #tpu.memory_space<vmem>>, %arg6: memref<1x8xbf16, #tpu.memory_space<vmem>>, %arg7: memref<1xf32, #tpu.memory_space<smem>>, %arg8: memref<1x1x256xf32, #tpu.memory_space<vmem>>) attributes {dimension_semantics = [#tpu.dimension_semantics<parallel>, #tpu.dimension_semantics<parallel>], iteration_bounds = array<i64: 2, 1>, scalar_prefetch = 0 : i64, scratch_operands = 0 : i64, tpu.core_type = #tpu.core_type<tc>, window_params = [{transform_indices = @transform_0, window_bounds = array<i64: 1, 2, 16, 256>}, {transform_indices = @transform_1, window_bounds = array<i64: 1, 2, 8>}, {pipeline_mode = #tpu.pipeline_mode<synchronous>, transform_indices = @transform_2, window_bounds = array<i64: 8, 16>}, {pipeline_mode = #tpu.pipeline_mode<synchronous>, transform_indices = @transform_3, window_bounds = array<i64: 8, 1>}, {pipeline_mode = #tpu.pipeline_mode<synchronous>, transform_indices = @transform_4, window_bounds = array<i64: 1, 8>}, {transform_indices = @transform_5, window_bounds = array<i64: 1>}, {transform_indices = @transform_6, window_bounds = array<i64: 1, 1, 256>}]} {
    %c0 = arith.constant 0 : index
    %c0_0 = arith.constant 0 : index
    %c0_1 = arith.constant 0 : index
    %c0_2 = arith.constant 0 : index
    %0 = vector.load %arg2[%c0, %c0_0, %c0_1, %c0_2] : memref<1x2x16x256xbf16, #tpu.memory_space<vmem>>, vector<1x1x16x256xbf16>
    %1 = vector.shape_cast %0 : vector<1x1x16x256xbf16> to vector<16x256xbf16>
    %c0_3 = arith.constant 0 : index
    %c1 = arith.constant 1 : index
    %c0_4 = arith.constant 0 : index
    %c0_5 = arith.constant 0 : index
    %2 = vector.load %arg2[%c0_3, %c1, %c0_4, %c0_5] : memref<1x2x16x256xbf16, #tpu.memory_space<vmem>>, vector<1x1x16x256xbf16>
    %3 = vector.shape_cast %2 : vector<1x1x16x256xbf16> to vector<16x256xbf16>
    %4 = arith.mulf %1, %3 : vector<16x256xbf16>
    %c0_6 = arith.constant 0 : index
    %c0_7 = arith.constant 0 : index
    %5 = vector.load %arg4[%c0_6, %c0_7] : memref<8x16xbf16, #tpu.memory_space<vmem>>, vector<8x16xbf16>
    %cst = arith.constant dense<0.000000e+00> : vector<8x256xf32>
    %6 = tpu.matmul %5, %4, %cst {dimension_numbers = #tpu.dot_dimension_numbers<[1], [0], [0], [1], [0, 0, 1, 1], [], []>} : vector<8x16xbf16>, vector<16x256xbf16>, vector<8x256xf32> -> vector<8x256xf32>
    %c0_8 = arith.constant 0 : index
    %c0_9 = arith.constant 0 : index
    %7 = vector.load %arg5[%c0_8, %c0_9] : memref<8x1xf32, #tpu.memory_space<vmem>>, vector<8x1xf32>
    %8 = vector.broadcast %7 : vector<8x1xf32> to vector<8x256xf32>
    %9 = arith.addf %6, %8 : vector<8x256xf32>
    %cst_10 = arith.constant 0.000000e+00 : f32
    %10 = vector.broadcast %cst_10 : f32 to vector<8x256xf32>
    %11 = arith.maximumf %9, %10 : vector<8x256xf32>
    %c0_11 = arith.constant 0 : index
    %c0_12 = arith.constant 0 : index
    %12 = vector.load %arg6[%c0_11, %c0_12] : memref<1x8xbf16, #tpu.memory_space<vmem>>, vector<1x8xbf16>
    %13 = arith.truncf %11 : vector<8x256xf32> to vector<8x256xbf16>
    %cst_13 = arith.constant dense<0.000000e+00> : vector<1x256xf32>
    %14 = tpu.matmul %12, %13, %cst_13 {dimension_numbers = #tpu.dot_dimension_numbers<[1], [0], [0], [1], [0, 0, 1, 1], [], []>} : vector<1x8xbf16>, vector<8x256xbf16>, vector<1x256xf32> -> vector<1x256xf32>
    %c0_14 = arith.constant 0 : index
    %15 = memref.load %arg7[%c0_14] : memref<1xf32, #tpu.memory_space<smem>>
    %16 = vector.broadcast %15 : f32 to vector<1x256xf32>
    %17 = arith.addf %14, %16 : vector<1x256xf32>
    %18 = vector.shape_cast %17 : vector<1x256xf32> to vector<1x256xf32>
    %19 = vector.broadcast %18 : vector<1x256xf32> to vector<8x256xf32>
    %cst_15 = arith.constant dense<0xFF800000> : vector<256xf32>
    %20 = vector.multi_reduction <maximumf>, %19, %cst_15 [0] : vector<8x256xf32> to vector<256xf32>
    %21 = vector.shape_cast %20 : vector<256xf32> to vector<1x256xf32>
    %22 = vector.broadcast %21 : vector<1x256xf32> to vector<8x256xf32>
    %23 = arith.subf %19, %22 : vector<8x256xf32>
    %24 = math.exp %23 : vector<8x256xf32>
    %25 = arith.truncf %24 : vector<8x256xf32> to vector<8x256xbf16>
    %c0_16 = arith.constant 0 : index
    %c0_17 = arith.constant 0 : index
    %c0_18 = arith.constant 0 : index
    %26 = vector.load %arg3[%c0_16, %c0_17, %c0_18] : memref<1x2x8xbf16, #tpu.memory_space<vmem>>, vector<1x2x8xbf16>
    %27 = vector.shape_cast %26 : vector<1x2x8xbf16> to vector<2x8xbf16>
    %cst_19 = arith.constant dense<0.000000e+00> : vector<2x256xf32>
    %28 = tpu.matmul %27, %25, %cst_19 {dimension_numbers = #tpu.dot_dimension_numbers<[1], [0], [0], [1], [0, 0, 1, 1], [], []>} : vector<2x8xbf16>, vector<8x256xbf16>, vector<2x256xf32> -> vector<2x256xf32>
    %29 = vector.extract_strided_slice %28 {offsets = [0, 0], sizes = [1, 256], strides = [1, 1]} : vector<2x256xf32> to vector<1x256xf32>
    %30 = vector.extract_strided_slice %28 {offsets = [1, 0], sizes = [1, 256], strides = [1, 1]} : vector<2x256xf32> to vector<1x256xf32>
    %31 = tpu.reciprocal %30 {approx = true} : vector<1x256xf32> -> vector<1x256xf32>
    %32 = arith.mulf %29, %31 : vector<1x256xf32>
    %c0_20 = arith.constant 0 : index
    %c0_21 = arith.constant 0 : index
    %c0_22 = arith.constant 0 : index
    %33 = vector.load %arg8[%c0_20, %c0_21, %c0_22] : memref<1x1x256xf32, #tpu.memory_space<vmem>>, vector<1x1x256xf32>
    %34 = vector.shape_cast %33 : vector<1x1x256xf32> to vector<1x256xf32>
    %35 = vector.shape_cast %32 : vector<1x256xf32> to vector<1x1x256xf32>
    tpu.vector_store %arg8[%c0_20, %c0_21, %c0_22], %35 {strides = array<i32>} : memref<1x1x256xf32, #tpu.memory_space<vmem>>, vector<1x1x256xf32>,
    return
  }
  func.func @transform_0(%arg0: i32, %arg1: i32) -> (i32, i32, i32, i32) {
    %c0_i32 = arith.constant 0 : i32
    %c0_i32_0 = arith.constant 0 : i32
    %c0_i32_1 = arith.constant 0 : i32
    return %arg0, %c0_i32, %c0_i32_0, %arg1 : i32, i32, i32, i32
  }
  func.func @transform_1(%arg0: i32, %arg1: i32) -> (i32, i32, i32) {
    %c0_i32 = arith.constant 0 : i32
    %c0_i32_0 = arith.constant 0 : i32
    %c0_i32_1 = arith.constant 0 : i32
    return %arg0, %c0_i32, %c0_i32_0 : i32, i32, i32
  }
  func.func @transform_2(%arg0: i32, %arg1: i32) -> (i32, i32) {
    %c0_i32 = arith.constant 0 : i32
    %c0_i32_0 = arith.constant 0 : i32
    %c0_i32_1 = arith.constant 0 : i32
    return %c0_i32, %c0_i32_0 : i32, i32
  }
  func.func @transform_3(%arg0: i32, %arg1: i32) -> (i32, i32) {
    %c0_i32 = arith.constant 0 : i32
    %c0_i32_0 = arith.constant 0 : i32
    %c0_i32_1 = arith.constant 0 : i32
    return %c0_i32, %c0_i32_0 : i32, i32
  }
  func.func @transform_4(%arg0: i32, %arg1: i32) -> (i32, i32) {
    %c0_i32 = arith.constant 0 : i32
    %c0_i32_0 = arith.constant 0 : i32
    %c0_i32_1 = arith.constant 0 : i32
    return %c0_i32, %c0_i32_0 : i32, i32
  }
  func.func @transform_5(%arg0: i32, %arg1: i32) -> i32 {
    %c0_i32 = arith.constant 0 : i32
    %c0_i32_0 = arith.constant 0 : i32
    return %c0_i32 : i32
  }
  func.func @transform_6(%arg0: i32, %arg1: i32) -> (i32, i32, i32) {
    %c0_i32 = arith.constant 0 : i32
    %c0_i32_0 = arith.constant 0 : i32
    return %arg0, %c0_i32, %arg1 : i32, i32, i32
  }
}

</mosaic_0001>

<llo_original>
// kernel: tpu_custom_call.1
$region0: #{tpu_custom_call.1}
  #allocation0 [shape = 'u32[]', space=smem, size = 0x4, offset = 0x4, fixed_abs, tag = 'smem constant byte address 0x4 - core index']
  #allocation1 [shape = 'u32[72,128]{1,0:T(1,128)}', space=vmem, size = 0x9000, scoped, tag = 'internal scratch']
  #allocation2 [shape = 'f32[1]{0:T(128)S(6)}', space=smem, size = 0x200, scoped, tag = 'scoped memory for tpu_custom_call.1']
  %s0 = inlined_call_operand.hbm [shape: bf16[2,2,16,256], index: 0, kind: input, shape index: {}]
  %s1 = inlined_call_operand.vmem [shape: bf16[2,2,8], index: 1, kind: input, shape index: {}]
  %s2 = inlined_call_operand.vmem [shape: bf16[8,16], index: 2, kind: input, shape index: {}]
  %s3 = inlined_call_operand.vmem [shape: f32[8,1], index: 3, kind: input, shape index: {}]
  %s4 = inlined_call_operand.vmem [shape: bf16[1,8], index: 4, kind: input, shape index: {}]
  %s5 = inlined_call_operand.<no memory space> [shape: f32[1], index: 5, kind: input, shape index: {}]
  %s6 = inlined_call_operand.hbm [shape: f32[2,1,256], index: 6, kind: output, shape index: {}]
  %s7 = sld [smem:[#allocation0]]
  $region61: #{tpu_custom_call.1} parent=0
    _
  %s9 = ssub.s32 1, %s7
  %s10 = scalar_select 0, %s9, %s7
  %11 = sst [smem:[#allocation2]] %s5
  $region1: #{tpu_custom_call.1} parent=0
    #allocation3 [shape = 'u8[32768]{0}', space=vmem, size = 0x8000, scoped, tag = 'input window, operand 0']
    #allocation4 [shape = 's32[2]{0}', space=sflag, size = 0x8, scoped, tag = 'scoped memory for tpu_custom_call.1']
    #allocation5 [shape = 's32[2]{0}', space=sflag, size = 0x8, scoped, tag = 'scoped memory for tpu_custom_call.1']
    #allocation6 [shape = 'u8[2048]{0}', space=vmem, size = 0x800, scoped, tag = 'output window, operand 0']
    %12 = vsyncpa [#allocation4], 0
    %s13 = scalar_lea.sflag [#allocation4], 1
    %14 = vsyncpa %s13, 0
    %15 = vsyncpa [#allocation5], 0
    %s16 = scalar_lea.sflag [#allocation5], 1
    %17 = vsyncpa %s16, 0
    loop: start=0, step=1, limit=4
    $region2: #{tpu_custom_call.1} parent=1 // loop_pre_header
      _
    $region3: #{tpu_custom_call.1} parent=1 // loop_header
      %s19 = sphi 0, %s23
      %p20 = scmp.ge.s32.totalorder %s19, 4
      %s26 = sphi 0, %s38
      %s27 = sphi 0, %s34
      %s28 = sphi 0, %s26
      %s29 = sphi 0, %s27
      %s30 = sphi 0, %s28
      %s31 = sphi 0, %s29
      %s43 = sphi 0, %s45
      %s46 = sphi 0, %s43
      %s47 = sphi 0, %s46
      %s63 = sphi 0, %s47
      %s69 = sphi 0, %s71
      %s72 = sphi 0, %s69
      %s73 = sphi 0, %s72
      %s89 = sphi 0, %s73
      %s93 = sphi 0, %s93
      %s95 = sphi 0, %s93
      %s96 = sphi 0, %s95
      %s110 = sphi 0, %s96
      %s114 = sphi 0, %s114
      %s116 = sphi 0, %s114
      %s117 = sphi 0, %s116
      %s131 = sphi 0, %s117
      %s135 = sphi 0, %s135
      %s137 = sphi 0, %s135
      %s138 = sphi 0, %s137
      %s152 = sphi 0, %s138
      %s156 = sphi 0, %s156
      %s158 = sphi 0, %s156
      %s159 = sphi 0, %s158
      %s173 = sphi 0, %s159
      %s181 = sphi 0, %s183
      %s184 = sphi 0, %s181
      %s185 = sphi 0, %s184
      %s201 = sphi 0, %s185
    $region4: #{tpu_custom_call.1} parent=1 // loop_header_branch
      %22 = sbr.rel (%p20) target = $region8
    $region5: #{tpu_custom_call.1} parent=1 // loop_body
      %s24 = ssub.s32 %s19, 1
      %s25 = ssub.s32 %s19, 2
      %s32 = sadd.s32 1, %s27
      %p33 = scmp.ge.s32.totalorder %s32, 1
      %s34 = scalar_select %p33, 0, %s32
      %s35 = sadd.s32 1, %s26
      %s36 = scalar_select %p33, %s35, %s26
      %p37 = scmp.ge.s32.totalorder %s36, 2
      %s38 = scalar_select %p37, 0, %s36
      %s39 = ssub.s32 %s26, %s38
      %s40 = ssub.s32 %s27, %s34
      %s41 = sor.u32 %s39, %s40
      %p42 = scmp.eq.s32.totalorder %s41, 0
      %s44 = sadd.s32 %s43, 1
      %s45 = scalar_select %p42, %s43, %s44
      %p48 = pneg %p42
      %p49 = scmp.eq.s32.totalorder %s19, 1
      %p50 = por %p48, %p49
      %p51 = scmp.ne.s32.totalorder %s43, %s46
      %p52 = scmp.eq.s32.totalorder %s19, 0
      %p53 = por %p51, %p52
      %p54 = scmp.ne.s32.totalorder %s43, %s46
      %p55 = scmp.eq.s32.totalorder %s24, 1
      %p56 = por %p54, %p55
      %p57 = scmp.ne.s32.totalorder %s46, %s47
      %p58 = scmp.eq.s32.totalorder %s24, 0
      %p59 = por %p57, %p58
      %p60 = scmp.ne.s32.totalorder %s46, %s47
      %p61 = scmp.eq.s32.totalorder %s25, 1
      %p62 = por %p60, %p61
      %p64 = scmp.ne.s32.totalorder %s47, %s63
      %p65 = scmp.eq.s32.totalorder %s25, 0
      %p66 = por %p64, %p65
      %s67 = ssub.s32 %s26, %s38
      %p68 = scmp.eq.s32.totalorder %s67, 0
      %s70 = sadd.s32 %s69, 1
      %s71 = scalar_select %p68, %s69, %s70
      %p74 = pneg %p68
      %p75 = scmp.eq.s32.totalorder %s19, 1
      %p76 = por %p74, %p75
      %p77 = scmp.ne.s32.totalorder %s69, %s72
      %p78 = scmp.eq.s32.totalorder %s19, 0
      %p79 = por %p77, %p78
      %p80 = scmp.ne.s32.totalorder %s69, %s72
      %p81 = scmp.eq.s32.totalorder %s24, 1
      %p82 = por %p80, %p81
      %p83 = scmp.ne.s32.totalorder %s72, %s73
      %p84 = scmp.eq.s32.totalorder %s24, 0
      %p85 = por %p83, %p84
      %p86 = scmp.ne.s32.totalorder %s72, %s73
      %p87 = scmp.eq.s32.totalorder %s25, 1
      %p88 = por %p86, %p87
      %p90 = scmp.ne.s32.totalorder %s73, %s89
      %p91 = scmp.eq.s32.totalorder %s25, 0
      %p92 = por %p90, %p91
      %s94 = sadd.s32 %s93, 1
      %p97 = scmp.eq.s32.totalorder %s19, 1
      %p98 = scmp.ne.s32.totalorder %s93, %s95
      %p99 = scmp.eq.s32.totalorder %s19, 0
      %p100 = por %p98, %p99
      %p101 = scmp.ne.s32.totalorder %s93, %s95
      %p102 = scmp.eq.s32.totalorder %s24, 1
      %p103 = por %p101, %p102
      %p104 = scmp.ne.s32.totalorder %s95, %s96
      %p105 = scmp.eq.s32.totalorder %s24, 0
      %p106 = por %p104, %p105
      %p107 = scmp.ne.s32.totalorder %s95, %s96
      %p108 = scmp.eq.s32.totalorder %s25, 1
      %p109 = por %p107, %p108
      %p111 = scmp.ne.s32.totalorder %s96, %s110
      %p112 = scmp.eq.s32.totalorder %s25, 0
      %p113 = por %p111, %p112
      %s115 = sadd.s32 %s114, 1
      %p118 = scmp.eq.s32.totalorder %s19, 1
      %p119 = scmp.ne.s32.totalorder %s114, %s116
      %p120 = scmp.eq.s32.totalorder %s19, 0
      %p121 = por %p119, %p120
      %p122 = scmp.ne.s32.totalorder %s114, %s116
      %p123 = scmp.eq.s32.totalorder %s24, 1
      %p124 = por %p122, %p123
      %p125 = scmp.ne.s32.totalorder %s116, %s117
      %p126 = scmp.eq.s32.totalorder %s24, 0
      %p127 = por %p125, %p126
      %p128 = scmp.ne.s32.totalorder %s116, %s117
      %p129 = scmp.eq.s32.totalorder %s25, 1
      %p130 = por %p128, %p129
      %p132 = scmp.ne.s32.totalorder %s117, %s131
      %p133 = scmp.eq.s32.totalorder %s25, 0
      %p134 = por %p132, %p133
      %s136 = sadd.s32 %s135, 1
      %p139 = scmp.eq.s32.totalorder %s19, 1
      %p140 = scmp.ne.s32.totalorder %s135, %s137
      %p141 = scmp.eq.s32.totalorder %s19, 0
      %p142 = por %p140, %p141
      %p143 = scmp.ne.s32.totalorder %s135, %s137
      %p144 = scmp.eq.s32.totalorder %s24, 1
      %p145 = por %p143, %p144
      %p146 = scmp.ne.s32.totalorder %s137, %s138
      %p147 = scmp.eq.s32.totalorder %s24, 0
      %p148 = por %p146, %p147
      %p149 = scmp.ne.s32.totalorder %s137, %s138
      %p150 = scmp.eq.s32.totalorder %s25, 1
      %p151 = por %p149, %p150
      %p153 = scmp.ne.s32.totalorder %s138, %s152
      %p154 = scmp.eq.s32.totalorder %s25, 0
      %p155 = por %p153, %p154
      %s157 = sadd.s32 %s156, 1
      %p160 = scmp.eq.s32.totalorder %s19, 1
      %p161 = scmp.ne.s32.totalorder %s156, %s158
      %p162 = scmp.eq.s32.totalorder %s19, 0
      %p163 = por %p161, %p162
      %p164 = scmp.ne.s32.totalorder %s156, %s158
      %p165 = scmp.eq.s32.totalorder %s24, 1
      %p166 = por %p164, %p165
      %p167 = scmp.ne.s32.totalorder %s158, %s159
      %p168 = scmp.eq.s32.totalorder %s24, 0
      %p169 = por %p167, %p168
      %p170 = scmp.ne.s32.totalorder %s158, %s159
      %p171 = scmp.eq.s32.totalorder %s25, 1
      %p172 = por %p170, %p171
      %p174 = scmp.ne.s32.totalorder %s159, %s173
      %p175 = scmp.eq.s32.totalorder %s25, 0
      %p176 = por %p174, %p175
      %s177 = ssub.s32 %s26, %s38
      %s178 = ssub.s32 %s27, %s34
      %s179 = sor.u32 %s177, %s178
      %p180 = scmp.eq.s32.totalorder %s179, 0
      %s182 = sadd.s32 %s181, 1
      %s183 = scalar_select %p180, %s181, %s182
      %p186 = pneg %p180
      %p187 = scmp.eq.s32.totalorder %s19, 1
      %p188 = por %p186, %p187
      %p189 = scmp.ne.s32.totalorder %s181, %s184
      %p190 = scmp.eq.s32.totalorder %s19, 0
      %p191 = por %p189, %p190
      %p192 = scmp.ne.s32.totalorder %s181, %s184
      %p193 = scmp.eq.s32.totalorder %s24, 1
      %p194 = por %p192, %p193
      %p195 = scmp.ne.s32.totalorder %s184, %s185
      %p196 = scmp.eq.s32.totalorder %s24, 0
      %p197 = por %p195, %p196
      %p198 = scmp.ne.s32.totalorder %s184, %s185
      %p199 = scmp.eq.s32.totalorder %s25, 1
      %p200 = por %p198, %p199
      %p202 = scmp.ne.s32.totalorder %s185, %s201
      %p203 = scmp.eq.s32.totalorder %s25, 0
      %p204 = por %p202, %p203
      %p205 = scmp.le.s32.totalorder 1, %s19
      %p206 = scmp.lt.s32.totalorder %s19, 3
      %p207 = pnand %p205, %p206
      %p208 = pneg %p207
      // Predicated region
      $region9: #{tpu_custom_call.1} parent=5 // pred_check
        _
      $region10: #{tpu_custom_call.1} parent=5 // pred_check_branch
        %210 = sbr.rel (%p207) target = $region12
      $region11: #{tpu_custom_call.1} parent=5 // pred_region
        %s211 = ssub.s32 %s19, 1
        // Predicated region
        $region13: #{tpu_custom_call.1} parent=11 // pred_check
          %p212 = pneg %p106
        $region14: #{tpu_custom_call.1} parent=11 // pred_check_branch
          %214 = sbr.rel (%p212) target = $region16
        $region15: #{tpu_custom_call.1} parent=11 // pred_region
          _
        $region16: #{tpu_custom_call.1} parent=11 // pred_fallthru
          _
        // Predicated region
        $region17: #{tpu_custom_call.1} parent=11 // pred_check
          %p215 = pneg %p127
        $region18: #{tpu_custom_call.1} parent=11 // pred_check_branch
          %217 = sbr.rel (%p215) target = $region20
        $region19: #{tpu_custom_call.1} parent=11 // pred_region
          _
        $region20: #{tpu_custom_call.1} parent=11 // pred_fallthru
          _
        // Predicated region
        $region21: #{tpu_custom_call.1} parent=11 // pred_check
          %p218 = pneg %p148
        $region22: #{tpu_custom_call.1} parent=11 // pred_check_branch
          %220 = sbr.rel (%p218) target = $region24
        $region23: #{tpu_custom_call.1} parent=11 // pred_region
          _
        $region24: #{tpu_custom_call.1} parent=11 // pred_fallthru
          _
        // Predicated region
        $region25: #{tpu_custom_call.1} parent=11 // pred_check
          %p221 = pneg %p169
        $region26: #{tpu_custom_call.1} parent=11 // pred_check_branch
          %223 = sbr.rel (%p221) target = $region28
        $region27: #{tpu_custom_call.1} parent=11 // pred_region
          _
        $region28: #{tpu_custom_call.1} parent=11 // pred_fallthru
          _
      $region12: #{tpu_custom_call.1} parent=5 // pred_fallthru
        _
      %p224 = scmp.lt.s32.totalorder %s19, 2
      // Predicated region
      $region29: #{tpu_custom_call.1} parent=5 // pred_check
        %p225 = pneg %p224
      $region30: #{tpu_custom_call.1} parent=5 // pred_check_branch
        %227 = sbr.rel (%p225) target = $region32
      $region31: #{tpu_custom_call.1} parent=5 // pred_region
        // Predicated region
        $region33: #{tpu_custom_call.1} parent=31 // pred_check
          %p228 = pneg %p53
        $region34: #{tpu_custom_call.1} parent=31 // pred_check_branch
          %230 = sbr.rel (%p228) target = $region36
        $region35: #{tpu_custom_call.1} parent=31 // pred_region
          %s231 = sand.u32 %s43, 1
          %s232 = scalar_lea.sflag [#allocation4], %s231
          %s233 = sand.u32 %s43, 1
          %s234 = smul.addr %s233, 32
          %s235 = scalar_lea.vmem [#allocation3], %s234
          %s236 = smul.u32 2, %s27
          %238 = vsyncadd %s232, 0
          %s239 = smul.addr %s26, 8
          %s240 = sadd.s32 %s236, %s239
          %s241 = smul.addr %s240, 4
          %s242 = scalar_lea.hbm %s0, %s241
          %s243 = sshll.u32 %s242, 4
          %s244 = int_to_ptr.hbm [resolvable:$true] %s243
          %s245 = sshll.u32 %s235, 4
          %s246 = int_to_ptr.vmem [resolvable:$true] %s245
          %251 = dma.hbm_to_vmem [thread:$0]  %s244, 512, %s246, %s232, 128, 128, 8
        $region36: #{tpu_custom_call.1} parent=31 // pred_fallthru
          _
        // Predicated region
        $region37: #{tpu_custom_call.1} parent=31 // pred_check
          %p252 = pneg %p79
        $region38: #{tpu_custom_call.1} parent=31 // pred_check_branch
          %254 = sbr.rel (%p252) target = $region40
        $region39: #{tpu_custom_call.1} parent=31 // pred_region
          %p255 = scmp.lt.s32.totalorder %s26, 1
          %s256 = scalar_select %p255, %s26, 1
          %s257 = scalar_lea.vmem %s1, %s256
        $region40: #{tpu_custom_call.1} parent=31 // pred_fallthru
          _
      $region32: #{tpu_custom_call.1} parent=5 // pred_fallthru
        _
      %p258 = scmp.le.s32.totalorder 1, %s19
      %p259 = scmp.lt.s32.totalorder %s19, 3
      %p260 = pnand %p258, %p259
      %p261 = pneg %p260
      // Predicated region
      $region41: #{tpu_custom_call.1} parent=5 // pred_check
        _
      $region42: #{tpu_custom_call.1} parent=5 // pred_check_branch
        %263 = sbr.rel (%p260) target = $region44
      $region43: #{tpu_custom_call.1} parent=5 // pred_region
        %s264 = ssub.s32 %s19, 1
        %s265 = sand.u32 %s46, 1
        %s266 = scalar_lea.sflag [#allocation4], %s265
        %s267 = sand.u32 %s46, 1
        %s268 = smul.addr %s267, 32
        %s269 = scalar_lea.vmem [#allocation3], %s268
        // Predicated region
        $region45: #{tpu_custom_call.1} parent=43 // pred_check
          %p270 = pneg %p59
        $region46: #{tpu_custom_call.1} parent=43 // pred_check_branch
          %272 = sbr.rel (%p270) target = $region48
        $region47: #{tpu_custom_call.1} parent=43 // pred_region
          %274 = dma.done %s266, 512
        $region48: #{tpu_custom_call.1} parent=43 // pred_fallthru
          _
        %s275 = sand.u32 %s46, 1
        %s276 = scalar_lea.sflag [#allocation4], %s275
        %s277 = sand.u32 %s46, 1
        %s278 = smul.addr %s277, 32
        %s279 = scalar_lea.vmem [#allocation3], %s278
        %p280 = pneg %p59
        %p281 = pneg %p56
        %p282 = scmp.lt.s32.totalorder %s28, 1
        %s283 = scalar_select %p282, %s28, 1
        %s284 = scalar_lea.vmem %s1, %s283
        %p285 = pneg %p85
        %p286 = pneg %p82
        %p287 = pneg %p106
        %p288 = pneg %p103
        %p289 = pneg %p127
        %p290 = pneg %p124
        %p291 = pneg %p148
        %p292 = pneg %p145
        %p293 = pneg %p169
        %p294 = pneg %p166
        %p295 = pneg %p197
        %p296 = pneg %p194
        %s297 = sand.u32 %s184, 1
        %s298 = scalar_lea.sflag [#allocation5], %s297
        %s299 = sand.u32 %s184, 1
        %s300 = smul.addr %s299, 2
        %s301 = scalar_lea.vmem [#allocation6], %s300
        %s302 = smul.u32 2, %s29
        %p303 = scmp.lt.s32.totalorder %s28, 1
        %s304 = scalar_select %p303, %s28, 1
        %s305 = scalar_lea.vmem %s1, %s304
        %s306 = smul.u32 2, %s29
        %v308 = vld [vmem:[%s269] sm:$0xff]
        %v309 = vld [vmem:[%s269 + $0x8] sm:$0xff]
        %s310 = scalar_lea.vmem %s269, 16 [#allocation3]
        %v311 = vld [vmem:[%s310] sm:$0xff]
        %v312 = vld [vmem:[%s310 + $0x8] sm:$0xff]
        %v313 = vunpack.c.l.bf16 %v308
        %v314 = vunpack.c.h.bf16 %v308
        %v315 = vunpack.c.l.bf16 %v309
        %v316 = vunpack.c.h.bf16 %v309
        %v317 = vunpack.c.l.bf16 %v311
        %v318 = vunpack.c.h.bf16 %v311
        %v319 = vunpack.c.l.bf16 %v312
        %v320 = vunpack.c.h.bf16 %v312
        %v321 = vmul.f32 %v313, %v317
        %v322 = vmul.f32 %v314, %v318
        %v323 = vmul.f32 %v315, %v319
        %v324 = vmul.f32 %v316, %v320
        %v325 = vpack.c.bf16 %v323, %v321
        %v326 = vpack.c.bf16 %v324, %v322
        %v327 = vld [vmem:[%s2] sm:$0xf]
        %v328 = vld [vmem:[%s3] sm:$0xff]
        %330 = vset.pattern.permute.xlu0 0
        %331 = vperm.xlu0 %330, %v328
        %v332 = vpop.permute.xlu0 %331
        %vm334 = vcmask 130048
        %v336 = vsel %vm334, %v327, 0
        %338 = vmatpush.bf16.msra.mxu0 0
        %339 = vmatpush.bf16.msra.mxu0 0
        %340 = vmatpush.bf16.msra.mxu0 0
        %341 = vmatpush.bf16.msra.mxu0 0
        %342 = vmatpush.bf16.msra.mxu0 0
        %343 = vmatpush.bf16.msra.mxu0 0
        %344 = vmatpush.bf16.msra.mxu0 0
        %345 = vmatpush.bf16.msra.mxu0 %v325
        %346 = vmatmul.bf16.gmra.mxu0 %v336
        %v347 = vpop.f32.mrf.mxu0
        %v348 = vadd.f32 %v332, %v347
        %v349 = vpop.f32.mrf.mxu0
        %350 = vdwg.mxu0
        %351 = vmatpush.bf16.msra.mxu0 0
        %352 = vmatpush.bf16.msra.mxu0 0
        %353 = vmatpush.bf16.msra.mxu0 0
        %354 = vmatpush.bf16.msra.mxu0 0
        %355 = vmatpush.bf16.msra.mxu0 0
        %356 = vmatpush.bf16.msra.mxu0 0
        %357 = vmatpush.bf16.msra.mxu0 0
        %358 = vmatpush.bf16.msra.mxu0 %v326
        %359 = vmatmul.bf16.gmra.mxu0 %v336
        %v360 = vpop.f32.mrf.mxu0
        %v361 = vadd.f32 %v332, %v360
        %v362 = vpop.f32.mrf.mxu0
        %363 = vdwg.mxu0
        %v364 = vmax.f32 %v348, 0.0
        %v365 = vmax.f32 %v361, 0.0
        %v366 = vld [vmem:[%s4] sm:$0x1]
        %v367 = vpack.c.bf16 %v364, %v364
        %v368 = vpack.c.bf16 %v365, %v365
        %s369 = sld [smem:[#allocation2]]
        %v370 = vstv %s369
        %vm371 = vcmask 64512
        %v373 = vsel %vm371, %v366, 0
        %vm375 = vcmask 1043456
        %v377 = vsel %vm375, %v367, 0
        %v380 = vsel %vm375, %v368, 0
        %382 = vmatpush.bf16.msra.mxu0 0
        %383 = vmatpush.bf16.msra.mxu0 0
        %384 = vmatpush.bf16.msra.mxu0 0
        %385 = vmatpush.bf16.msra.mxu0 0
        %386 = vmatpush.bf16.msra.mxu0 0
        %387 = vmatpush.bf16.msra.mxu0 0
        %388 = vmatpush.bf16.msra.mxu0 0
        %389 = vmatpush.bf16.msra.mxu0 %v377
        %390 = vmatmul.bf16.gmra.mxu0 %v373
        %v391 = vpop.f32.mrf.mxu0
        %v392 = vadd.f32 %v370, %v391
        %v393 = vpop.f32.mrf.mxu0
        %394 = vdwg.mxu0
        %395 = vmatpush.bf16.msra.mxu0 0
        %396 = vmatpush.bf16.msra.mxu0 0
        %397 = vmatpush.bf16.msra.mxu0 0
        %398 = vmatpush.bf16.msra.mxu0 0
        %399 = vmatpush.bf16.msra.mxu0 0
        %400 = vmatpush.bf16.msra.mxu0 0
        %401 = vmatpush.bf16.msra.mxu0 0
        %402 = vmatpush.bf16.msra.mxu0 %v380
        %403 = vmatmul.bf16.gmra.mxu0 %v373
        %v404 = vpop.f32.mrf.mxu0
        %v405 = vadd.f32 %v370, %v404
        %v406 = vpop.f32.mrf.mxu0
        %407 = vdwg.mxu0
        %v408 = vperm.slane %v392, 0
        %v409 = vperm.slane %v405, 0
        %v410 = vsub.f32 %v408, %v408
        %v411 = vsub.f32 %v409, %v409
        %v412 = vmul.f32 %v410, 1.442695
        %v413 = vpow.pop %v412
        %v414 = vmul.f32 %v411, 1.442695
        %v415 = vpow.pop %v414
        %v416 = vpack.c.bf16 %v413, %v413
        %v417 = vpack.c.bf16 %v415, %v415
        %v418 = vld [vmem:[%s305] sm:$0x1]
        %v420 = vsel %vm371, %v418, 0
        %v423 = vsel %vm375, %v416, 0
        %v426 = vsel %vm375, %v417, 0
        %428 = vmatpush.bf16.msra.mxu0 0
        %429 = vmatpush.bf16.msra.mxu0 0
        %430 = vmatpush.bf16.msra.mxu0 0
        %431 = vmatpush.bf16.msra.mxu0 0
        %432 = vmatpush.bf16.msra.mxu0 0
        %433 = vmatpush.bf16.msra.mxu0 0
        %434 = vmatpush.bf16.msra.mxu0 0
        %435 = vmatpush.bf16.msra.mxu0 %v423
        %436 = vmatmul.bf16.gmra.mxu0 %v420
        %v437 = vpop.f32.mrf.mxu0
        %v438 = vadd.f32 0.0, %v437
        %v439 = vpop.f32.mrf.mxu0
        %440 = vdwg.mxu0
        %441 = vmatpush.bf16.msra.mxu0 0
        %442 = vmatpush.bf16.msra.mxu0 0
        %443 = vmatpush.bf16.msra.mxu0 0
        %444 = vmatpush.bf16.msra.mxu0 0
        %445 = vmatpush.bf16.msra.mxu0 0
        %446 = vmatpush.bf16.msra.mxu0 0
        %447 = vmatpush.bf16.msra.mxu0 0
        %448 = vmatpush.bf16.msra.mxu0 %v426
        %449 = vmatmul.bf16.gmra.mxu0 %v420
        %v450 = vpop.f32.mrf.mxu0
        %v451 = vadd.f32 0.0, %v450
        %v452 = vpop.f32.mrf.mxu0
        %453 = vdwg.mxu0
        %v454 = vrcp.pop %v438
        %v455 = vrcp.pop %v451
        %v458 = vrot.slane %v454, 1
        %v459 = vrot.slane %v455, 1
        %v462 = vmul.f32 %v438, %v458
        %v463 = vmul.f32 %v451, %v459
        %v466 = vrot.slane %v463, 7
        %vm467 = vcmask 1040384
        %v468 = vsel %vm467, %v462, %v466
        %v470 = vlaneseq
        %vm471 = vcmp.ge.s32.totalorder %v470, 0
        %vm472 = vcmp.lt.s32.totalorder %v470, 256
        %vm473 = vmand %vm471, %vm472
        %474 = vst.msk [vmem:[%s301] sm:$0x3] %vm473, %v468
        %s475 = sand.u32 %s184, 1
        %s476 = scalar_lea.sflag [#allocation5], %s475
        %s477 = sand.u32 %s184, 1
        %s478 = smul.addr %s477, 2
        %s479 = scalar_lea.vmem [#allocation6], %s478
        // Predicated region
        $region49: #{tpu_custom_call.1} parent=43 // pred_check
          %p480 = pneg %p194
        $region50: #{tpu_custom_call.1} parent=43 // pred_check_branch
          %482 = sbr.rel (%p480) target = $region52
        $region51: #{tpu_custom_call.1} parent=43 // pred_region
          %s483 = smul.u32 2, %s29
          %485 = vsyncadd %s476, 0
          %s486 = smul.addr %s28, 2
          %s487 = sadd.s32 %s483, %s486
          %s488 = scalar_lea.hbm %s6, %s487
          %s490 = sshll.u32 %s479, 4
          %s491 = int_to_ptr.vmem [resolvable:$true] %s490
          %s492 = sshll.u32 %s488, 4
          %s493 = int_to_ptr.hbm [resolvable:$true] %s492
          %495 = dma.vmem_to_hbm [thread:$0]  %s491, 32, %s493, %s476
        $region52: #{tpu_custom_call.1} parent=43 // pred_fallthru
          _
      $region44: #{tpu_custom_call.1} parent=5 // pred_fallthru
        _
      %p496 = scmp.le.s32.totalorder 2, %s19
      // Predicated region
      $region53: #{tpu_custom_call.1} parent=5 // pred_check
        %p497 = pneg %p496
      $region54: #{tpu_custom_call.1} parent=5 // pred_check_branch
        %499 = sbr.rel (%p497) target = $region56
      $region55: #{tpu_custom_call.1} parent=5 // pred_region
        %s500 = ssub.s32 %s19, 2
        // Predicated region
        $region57: #{tpu_custom_call.1} parent=55 // pred_check
          %p501 = pneg %p200
        $region58: #{tpu_custom_call.1} parent=55 // pred_check_branch
          %503 = sbr.rel (%p501) target = $region60
        $region59: #{tpu_custom_call.1} parent=55 // pred_region
          %s504 = sand.u32 %s185, 1
          %s505 = scalar_lea.sflag [#allocation5], %s504
          %s506 = sand.u32 %s185, 1
          %s507 = smul.addr %s506, 2
          %s508 = scalar_lea.vmem [#allocation6], %s507
          %510 = dma.done %s505, 32
        $region60: #{tpu_custom_call.1} parent=55 // pred_fallthru
          _
      $region56: #{tpu_custom_call.1} parent=5 // pred_fallthru
        _
    $region6: #{tpu_custom_call.1} parent=1 // loop_footer
      %s23 = sadd.s32 1, %s19
    $region7: #{tpu_custom_call.1} parent=1 // loop_footer_branch
      %18 = sbr.rel target = $region3
    $region8: #{tpu_custom_call.1} parent=1 // loop_exit
      _
    %511 = vsyncpa [#allocation4], 1
    %s512 = scalar_lea.sflag [#allocation4], 1
    %513 = vsyncpa %s512, 1
    %514 = vsyncpa [#allocation5], 1
    %s515 = scalar_lea.sflag [#allocation5], 1
    %516 = vsyncpa %s515, 1

</llo_original>
